<compile_context>
chip_gen: v7x
topology: tpu7x:2x2x1
jax: 0.10.0
libtpu: 0.0.40
codegen_flags: <defaults>
</compile_context>

<pallas_src>
import functools

import jax
import jax.numpy as jnp
from jax.experimental import pallas as pl
from jax.experimental.pallas import tpu as pltpu

_ROW_ALIGN = 8  # f32 sublane packing


def _round_up(x, m):
    return (x + m - 1) // m * m


def _pick_tile(rows, tile_rows):
    """Row-tile selection: large tiles, >= 2 grid steps when feasible."""
    tile_rows = max(_ROW_ALIGN, (tile_rows // _ROW_ALIGN) * _ROW_ALIGN)
    if rows > tile_rows:
        return tile_rows
    # Whole problem fits in one tile. If it is big enough, split it in two so
    # the "parallel" row axis can shard across v7x's 2 TensorCores / megacore.
    if rows > 2 * _ROW_ALIGN:
        return min(rows, _round_up(pl.cdiv(rows, 2), _ROW_ALIGN))
    return rows


def bert_self_output_kernel(h_ref, inp_ref, w_ref, b_ref, g_ref, beta_ref,
                            o_ref, *, eps):
    # Dense: y = h @ W^T + b   (w_ref already holds W^T -> [H_in, H_out], bf16).
    # Activations arrive in their native dtype (f32 in the demo); the bf16 cast
    # for the MXU is done here on the VPU (free slot), accumulation is f32.
    h_bf16 = h_ref[...].astype(jnp.bfloat16)
    y = jnp.dot(h_bf16, w_ref[...], preferred_element_type=jnp.float32)
    y = y + b_ref[...]                                    # (TM, H) + (1, H), f32

    # TODO(synk): dropout is identity in inference mode; training-mode dropout
    # would use pltpu.prng_seed / pltpu.prng_random_bits to build the mask.

    # Residual add in native f32 (no bf16 round-trip on the residual path).
    z = y + inp_ref[...].astype(jnp.float32)

    # LayerNorm over the last axis — two-pass statistics (numerically safer
    # than E[z^2] - mean^2; the extra pass is free, kernel is HBM/MXU-bound).
    h = z.shape[-1]
    inv_h = 1.0 / h
    mean = jnp.sum(z, axis=-1, keepdims=True) * inv_h
    zc = z - mean
    var = jnp.sum(zc * zc, axis=-1, keepdims=True) * inv_h
    inv = jax.lax.rsqrt(var + eps)                        # EUP
    out = zc * inv * g_ref[...] + beta_ref[...]

    o_ref[...] = out.astype(o_ref.dtype)


def bert_self_output(hidden_states, input_tensor, weight_t, bias, gamma, beta,
                     *, eps=1e-12, tile_rows=512, out_dtype=None):
    """Fused BertSelfOutput forward.

    hidden_states, input_tensor : [B, S, H]  (streamed in their native dtype)
    weight_t                    : [H_in, H_out]  (nn.Linear weight, transposed ONCE outside)
    bias, gamma, beta           : [H]
    out_dtype                   : output dtype (default: hidden_states.dtype);
                                  pass jnp.bfloat16 to halve output HBM traffic.
    """
    B, S, H = hidden_states.shape
    rows = B * S
    if out_dtype is None:
        out_dtype = hidden_states.dtype

    # Reshapes are metadata-only for contiguous [B,S,H]; NO activation casts here.
    h2 = hidden_states.reshape(rows, H)
    i2 = input_tensor.reshape(rows, H)
    # Param-sized one-off casts (negligible vs. activation traffic; in a real
    # model, store the weight in bf16 and these become no-ops).
    w = weight_t.astype(jnp.bfloat16)                     # [H_in, H_out]
    b2 = bias.reshape(1, H).astype(jnp.float32)
    g2 = gamma.reshape(1, H).astype(jnp.float32)
    be2 = beta.reshape(1, H).astype(jnp.float32)

    tile = _pick_tile(rows, tile_rows)
    grid = (pl.cdiv(rows, tile),)                         # ragged tail handled by Pallas

    kernel = functools.partial(bert_self_output_kernel, eps=eps)

    cost = pl.CostEstimate(
        flops=2 * rows * H * H,
        transcendentals=rows,                             # one rsqrt per row
        bytes_accessed=(rows * H * (h2.dtype.itemsize + i2.dtype.itemsize
                                    + jnp.dtype(out_dtype).itemsize)
                        + H * H * 2 + 3 * H * 4),
    )

    out = pl.pallas_call(
        kernel,
        out_shape=jax.ShapeDtypeStruct((rows, H), out_dtype),
        grid_spec=pltpu.PrefetchScalarGridSpec(
            num_scalar_prefetch=0,
            grid=grid,
            in_specs=[
                pl.BlockSpec((tile, H), lambda i: (i, 0)),   # hidden_states (streamed)
                pl.BlockSpec((tile, H), lambda i: (i, 0)),   # input_tensor  (streamed)
                # Resident operands: constant block index -> fetched once and
                # held across the grid; single-buffered (no dead 2nd buffer).
                pl.BlockSpec((H, H), lambda i: (0, 0),
                             pipeline_mode=pl.Buffered(1)),  # W^T (bf16)
                pl.BlockSpec((1, H), lambda i: (0, 0),
                             pipeline_mode=pl.Buffered(1)),  # bias
                pl.BlockSpec((1, H), lambda i: (0, 0),
                             pipeline_mode=pl.Buffered(1)),  # gamma
                pl.BlockSpec((1, H), lambda i: (0, 0),
                             pipeline_mode=pl.Buffered(1)),  # beta
            ],
            out_specs=pl.BlockSpec((tile, H), lambda i: (i, 0)),
        ),
        compiler_params=pltpu.CompilerParams(
            dimension_semantics=("parallel",),               # megacore / 2-TC shardable
            vmem_limit_bytes=32 * 1024 * 1024,               # lets tile=512 fit on v5e too
        ),
        cost_estimate=cost,
    )(h2, i2, w, b2, g2, be2)

    return out.reshape(B, S, H)


def reference_f32(hidden_states, input_tensor, weight_t, bias, gamma, beta,
                  eps=1e-12):
    """Pure-f32 reference == the PyTorch module forward (dropout = identity)."""
    B, S, H = hidden_states.shape
    h = hidden_states.reshape(-1, H).astype(jnp.float32)
    y = jnp.dot(h, weight_t.astype(jnp.float32)) + bias.astype(jnp.float32)
    z = y + input_tensor.reshape(-1, H).astype(jnp.float32)
    mean = jnp.mean(z, axis=-1, keepdims=True)
    var = jnp.mean((z - mean) ** 2, axis=-1, keepdims=True)
    out = (z - mean) * jax.lax.rsqrt(var + eps) * gamma + beta
    return out.reshape(B, S, H).astype(hidden_states.dtype)


def reference_kernel_recipe(hidden_states, input_tensor, weight_t, bias, gamma,
                            beta, eps=1e-12):
    """Mirrors the kernel numerics: bf16 MXU operands, f32 accum/residual/LN."""
    B, S, H = hidden_states.shape
    h = hidden_states.reshape(-1, H).astype(jnp.bfloat16)
    w = weight_t.astype(jnp.bfloat16)
    y = jnp.dot(h, w, preferred_element_type=jnp.float32) + bias.astype(jnp.float32)
    z = y + input_tensor.reshape(-1, H).astype(jnp.float32)
    mean = jnp.mean(z, axis=-1, keepdims=True)
    zc = z - mean
    var = jnp.mean(zc * zc, axis=-1, keepdims=True)
    out = zc * jax.lax.rsqrt(var + eps) * gamma + beta
    return out.reshape(B, S, H).astype(hidden_states.dtype)


if __name__ == "__main__":
    def run_case(B, S, H, tile_rows, key):
        k1, k2, k3, k4, k5, k6 = jax.random.split(key, 6)
        hidden_states = jax.random.normal(k1, (B, S, H), dtype=jnp.float32)
        input_tensor = jax.random.normal(k2, (B, S, H), dtype=jnp.float32)
        weight = jax.random.normal(k3, (H, H), dtype=jnp.float32) * 0.02  # [H_out, H_in]
        bias = jax.random.normal(k4, (H,), dtype=jnp.float32) * 0.02
        gamma = 1.0 + 0.1 * jax.random.normal(k5, (H,), dtype=jnp.float32)
        beta = 0.1 * jax.random.normal(k6, (H,), dtype=jnp.float32)

        # Pre-transpose the Linear weight ONCE, outside the per-call path.
        weight_t = jnp.asarray(weight.T)                  # [H_in, H_out]

        out = bert_self_output(hidden_states, input_tensor, weight_t, bias,
                               gamma, beta, tile_rows=tile_rows)
        out = jax.block_until_ready(out)
        assert out.shape == (B, S, H)

        # Tight check vs. a reference mirroring the kernel's bf16/f32 recipe.
        ref_k = reference_kernel_recipe(hidden_states, input_tensor, weight_t,
                                        bias, gamma, beta)
        assert jnp.allclose(out, ref_k, atol=2e-4, rtol=2e-4), (
            f"mismatch vs kernel-recipe reference for shape {(B, S, H)}")

        # Looser check vs. the pure-f32 PyTorch-semantics reference (bounds the
        # true error introduced by the bf16 MXU path).
        ref_f = reference_f32(hidden_states, input_tensor, weight_t, bias,
                              gamma, beta)
        assert jnp.allclose(out, ref_f, atol=2e-2, rtol=2e-2), (
            f"mismatch vs pure-f32 reference for shape {(B, S, H)}")

    key = jax.random.PRNGKey(0)
    ka, kb = jax.random.split(key)

    # Small shape with a non-divisible row count (rows=18 -> tile=16, 2-step
    # grid with a ragged tail block; no padding copies).
    run_case(B=2, S=9, H=32, tile_rows=512, key=ka)
    # Multi-step grid (8 steps) with the weight held resident across steps.
    run_case(B=4, S=128, H=128, tile_rows=64, key=kb)

    print("KERNEL_OK")
</pallas_src>

<mosaic_0001>
module attributes {stable_mosaic.version = 11 : i64} {
  func.func @bert_self_output_kernel(%arg0: i32, %arg1: memref<16x32xf32, #tpu.memory_space<vmem>>, %arg2: memref<16x32xf32, #tpu.memory_space<vmem>>, %arg3: memref<32x32xbf16, #tpu.memory_space<vmem>>, %arg4: memref<1x32xf32, #tpu.memory_space<vmem>>, %arg5: memref<1x32xf32, #tpu.memory_space<vmem>>, %arg6: memref<1x32xf32, #tpu.memory_space<vmem>>, %arg7: memref<16x32xf32, #tpu.memory_space<vmem>>) attributes {dimension_semantics = [#tpu.dimension_semantics<parallel>], iteration_bounds = array<i64: 2>, scalar_prefetch = 0 : i64, scratch_operands = 0 : i64, tpu.core_type = #tpu.core_type<tc>, window_params = [{transform_indices = @transform_0, window_bounds = array<i64: 16, 32>}, {transform_indices = @transform_1, window_bounds = array<i64: 16, 32>}, {pipeline_mode = #tpu.pipeline_mode<synchronous>, transform_indices = @transform_2, window_bounds = array<i64: 32, 32>}, {pipeline_mode = #tpu.pipeline_mode<synchronous>, transform_indices = @transform_3, window_bounds = array<i64: 1, 32>}, {pipeline_mode = #tpu.pipeline_mode<synchronous>, transform_indices = @transform_4, window_bounds = array<i64: 1, 32>}, {pipeline_mode = #tpu.pipeline_mode<synchronous>, transform_indices = @transform_5, window_bounds = array<i64: 1, 32>}, {transform_indices = @transform_6, window_bounds = array<i64: 16, 32>}]} {
    %c0 = arith.constant 0 : index
    %c0_0 = arith.constant 0 : index
    %0 = vector.load %arg1[%c0, %c0_0] : memref<16x32xf32, #tpu.memory_space<vmem>>, vector<16x32xf32>
    %1 = arith.truncf %0 : vector<16x32xf32> to vector<16x32xbf16>
    %c0_1 = arith.constant 0 : index
    %c0_2 = arith.constant 0 : index
    %2 = vector.load %arg3[%c0_1, %c0_2] : memref<32x32xbf16, #tpu.memory_space<vmem>>, vector<32x32xbf16>
    %cst = arith.constant dense<0.000000e+00> : vector<16x32xf32>
    %3 = tpu.matmul %1, %2, %cst {dimension_numbers = #tpu.dot_dimension_numbers<[1], [0], [0], [1], [0, 0, 1, 1], [], []>} : vector<16x32xbf16>, vector<32x32xbf16>, vector<16x32xf32> -> vector<16x32xf32>
    %c0_3 = arith.constant 0 : index
    %c0_4 = arith.constant 0 : index
    %4 = vector.load %arg4[%c0_3, %c0_4] : memref<1x32xf32, #tpu.memory_space<vmem>>, vector<1x32xf32>
    %5 = vector.broadcast %4 : vector<1x32xf32> to vector<16x32xf32>
    %6 = arith.addf %3, %5 : vector<16x32xf32>
    %c0_5 = arith.constant 0 : index
    %c0_6 = arith.constant 0 : index
    %7 = vector.load %arg2[%c0_5, %c0_6] : memref<16x32xf32, #tpu.memory_space<vmem>>, vector<16x32xf32>
    %8 = arith.addf %6, %7 : vector<16x32xf32>
    %cst_7 = arith.constant dense<0.000000e+00> : vector<16xf32>
    %9 = vector.multi_reduction <add>, %8, %cst_7 [1] : vector<16x32xf32> to vector<16xf32>
    %10 = vector.shape_cast %9 : vector<16xf32> to vector<16x1xf32>
    %cst_8 = arith.constant 3.125000e-02 : f32
    %11 = vector.broadcast %cst_8 : f32 to vector<16x1xf32>
    %12 = arith.mulf %10, %11 : vector<16x1xf32>
    %13 = vector.broadcast %12 : vector<16x1xf32> to vector<16x32xf32>
    %14 = arith.subf %8, %13 : vector<16x32xf32>
    %15 = arith.mulf %14, %14 : vector<16x32xf32>
    %cst_9 = arith.constant dense<0.000000e+00> : vector<16xf32>
    %16 = vector.multi_reduction <add>, %15, %cst_9 [1] : vector<16x32xf32> to vector<16xf32>
    %17 = vector.shape_cast %16 : vector<16xf32> to vector<16x1xf32>
    %cst_10 = arith.constant 3.125000e-02 : f32
    %18 = vector.broadcast %cst_10 : f32 to vector<16x1xf32>
    %19 = arith.mulf %17, %18 : vector<16x1xf32>
    %cst_11 = arith.constant 9.99999996E-13 : f32
    %20 = vector.broadcast %cst_11 : f32 to vector<16x1xf32>
    %21 = arith.addf %19, %20 : vector<16x1xf32>
    %22 = math.rsqrt %21 : vector<16x1xf32>
    %23 = vector.broadcast %22 : vector<16x1xf32> to vector<16x32xf32>
    %24 = arith.mulf %14, %23 : vector<16x32xf32>
    %c0_12 = arith.constant 0 : index
    %c0_13 = arith.constant 0 : index
    %25 = vector.load %arg5[%c0_12, %c0_13] : memref<1x32xf32, #tpu.memory_space<vmem>>, vector<1x32xf32>
    %26 = vector.broadcast %25 : vector<1x32xf32> to vector<16x32xf32>
    %27 = arith.mulf %24, %26 : vector<16x32xf32>
    %c0_14 = arith.constant 0 : index
    %c0_15 = arith.constant 0 : index
    %28 = vector.load %arg6[%c0_14, %c0_15] : memref<1x32xf32, #tpu.memory_space<vmem>>, vector<1x32xf32>
    %29 = vector.broadcast %28 : vector<1x32xf32> to vector<16x32xf32>
    %30 = arith.addf %27, %29 : vector<16x32xf32>
    %c0_16 = arith.constant 0 : index
    %c0_17 = arith.constant 0 : index
    %31 = vector.load %arg7[%c0_16, %c0_17] : memref<16x32xf32, #tpu.memory_space<vmem>>, vector<16x32xf32>
    tpu.vector_store %arg7[%c0_16, %c0_17], %30 {strides = array<i32>} : memref<16x32xf32, #tpu.memory_space<vmem>>, vector<16x32xf32>,
    return
  }
  func.func @transform_0(%arg0: i32) -> (i32, i32) {
    %c0_i32 = arith.constant 0 : i32
    %c0_i32_0 = arith.constant 0 : i32
    return %arg0, %c0_i32 : i32, i32
  }
  func.func @transform_1(%arg0: i32) -> (i32, i32) {
    %c0_i32 = arith.constant 0 : i32
    %c0_i32_0 = arith.constant 0 : i32
    return %arg0, %c0_i32 : i32, i32
  }
  func.func @transform_2(%arg0: i32) -> (i32, i32) {
    %c0_i32 = arith.constant 0 : i32
    %c0_i32_0 = arith.constant 0 : i32
    %c0_i32_1 = arith.constant 0 : i32
    return %c0_i32, %c0_i32_0 : i32, i32
  }
  func.func @transform_3(%arg0: i32) -> (i32, i32) {
    %c0_i32 = arith.constant 0 : i32
    %c0_i32_0 = arith.constant 0 : i32
    %c0_i32_1 = arith.constant 0 : i32
    return %c0_i32, %c0_i32_0 : i32, i32
  }
  func.func @transform_4(%arg0: i32) -> (i32, i32) {
    %c0_i32 = arith.constant 0 : i32
    %c0_i32_0 = arith.constant 0 : i32
    %c0_i32_1 = arith.constant 0 : i32
    return %c0_i32, %c0_i32_0 : i32, i32
  }
  func.func @transform_5(%arg0: i32) -> (i32, i32) {
    %c0_i32 = arith.constant 0 : i32
    %c0_i32_0 = arith.constant 0 : i32
    %c0_i32_1 = arith.constant 0 : i32
    return %c0_i32, %c0_i32_0 : i32, i32
  }
  func.func @transform_6(%arg0: i32) -> (i32, i32) {
    %c0_i32 = arith.constant 0 : i32
    %c0_i32_0 = arith.constant 0 : i32
    return %arg0, %c0_i32 : i32, i32
  }
}

</mosaic_0001>

<llo_original>
// kernel: tpu_custom_call.1
$region0: #{tpu_custom_call.1}
  #allocation0 [shape = 'u32[]', space=smem, size = 0x4, offset = 0x4, fixed_abs, tag = 'smem constant byte address 0x4 - core index']
  #allocation1 [shape = 'u32[144,128]{1,0:T(1,128)}', space=vmem, size = 0x12000, scoped, tag = 'internal scratch']
  %s0 = inlined_call_operand.hbm [shape: f32[18,32], index: 0, kind: input, shape index: {}]
  %s1 = inlined_call_operand.hbm [shape: f32[18,32], index: 1, kind: input, shape index: {}]
  %s2 = inlined_call_operand.hbm [shape: bf16[32,32], index: 2, kind: input, shape index: {}]
  %s3 = inlined_call_operand.vmem [shape: f32[1,32], index: 3, kind: input, shape index: {}]
  %s4 = inlined_call_operand.vmem [shape: f32[1,32], index: 4, kind: input, shape index: {}]
  %s5 = inlined_call_operand.vmem [shape: f32[1,32], index: 5, kind: input, shape index: {}]
  %s6 = inlined_call_operand.hbm [shape: f32[18,32], index: 6, kind: output, shape index: {}]
  %s7 = sld [smem:[#allocation0]]
  $region69: #{tpu_custom_call.1} parent=0
    _
  %s9 = ssub.s32 1, %s7
  %s10 = scalar_select 0, %s9, %s7
  $region1: #{tpu_custom_call.1} parent=0
    #allocation2 [shape = 'u8[16384]{0}', space=vmem, size = 0x4000, scoped, tag = 'input window, operand 0']
    #allocation3 [shape = 's32[2]{0}', space=sflag, size = 0x8, scoped, tag = 'scoped memory for tpu_custom_call.1']
    #allocation4 [shape = 's32[2]{0}', space=sflag, size = 0x8, scoped, tag = 'scoped memory for tpu_custom_call.1']
    #allocation5 [shape = 'u8[16384]{0}', space=vmem, size = 0x4000, scoped, tag = 'input window, operand 1']
    #allocation6 [shape = 's32[2]{0}', space=sflag, size = 0x8, scoped, tag = 'scoped memory for tpu_custom_call.1']
    #allocation7 [shape = 'u8[8192]{0}', space=vmem, size = 0x2000, scoped, tag = 'input window, operand 2, single buffered']
    #allocation8 [shape = 'u8[16384]{0}', space=vmem, size = 0x4000, scoped, tag = 'output window, operand 0']
    %11 = vsyncpa [#allocation3], 0
    %s12 = scalar_lea.sflag [#allocation3], 1
    %13 = vsyncpa %s12, 0
    %14 = vsyncpa [#allocation6], 0
    %s15 = scalar_lea.sflag [#allocation6], 1
    %16 = vsyncpa %s15, 0
    %17 = vsyncpa [#allocation4], 0
    %s18 = scalar_lea.sflag [#allocation4], 1
    %19 = vsyncpa %s18, 0
    loop: start=0, step=1, limit=4
    $region2: #{tpu_custom_call.1} parent=1 // loop_pre_header
      _
    $region3: #{tpu_custom_call.1} parent=1 // loop_header
      %s21 = sphi 0, %s25
      %p22 = scmp.ge.s32.totalorder %s21, 4
      %s31 = sphi 0, %s33
      %s34 = sphi 0, %s31
      %s35 = sphi 0, %s34
      %s51 = sphi 0, %s35
      %s57 = sphi 0, %s59
      %s60 = sphi 0, %s57
      %s61 = sphi 0, %s60
      %s77 = sphi 0, %s61
      %s81 = sphi 0, %s81
      %s83 = sphi 0, %s81
      %s84 = sphi 0, %s83
      %s98 = sphi 0, %s84
      %s102 = sphi 0, %s102
      %s104 = sphi 0, %s102
      %s105 = sphi 0, %s104
      %s119 = sphi 0, %s105
      %s123 = sphi 0, %s123
      %s125 = sphi 0, %s123
      %s126 = sphi 0, %s125
      %s140 = sphi 0, %s126
      %s144 = sphi 0, %s144
      %s146 = sphi 0, %s144
      %s147 = sphi 0, %s146
      %s161 = sphi 0, %s147
      %s167 = sphi 0, %s169
      %s170 = sphi 0, %s167
      %s171 = sphi 0, %s170
      %s187 = sphi 0, %s171
    $region4: #{tpu_custom_call.1} parent=1 // loop_header_branch
      %24 = sbr.rel (%p22) target = $region8
    $region5: #{tpu_custom_call.1} parent=1 // loop_body
      %s26 = ssub.s32 %s21, 1
      %s27 = ssub.s32 %s21, 2
      %s28 = sadd.s32 %s21, 1
      %s29 = ssub.s32 %s21, %s28
      %p30 = scmp.eq.s32.totalorder %s29, 0
      %s32 = sadd.s32 %s31, 1
      %s33 = scalar_select %p30, %s31, %s32
      %p36 = pneg %p30
      %p37 = scmp.eq.s32.totalorder %s21, 1
      %p38 = por %p36, %p37
      %p39 = scmp.ne.s32.totalorder %s31, %s34
      %p40 = scmp.eq.s32.totalorder %s21, 0
      %p41 = por %p39, %p40
      %p42 = scmp.ne.s32.totalorder %s31, %s34
      %p43 = scmp.eq.s32.totalorder %s26, 1
      %p44 = por %p42, %p43
      %p45 = scmp.ne.s32.totalorder %s34, %s35
      %p46 = scmp.eq.s32.totalorder %s26, 0
      %p47 = por %p45, %p46
      %p48 = scmp.ne.s32.totalorder %s34, %s35
      %p49 = scmp.eq.s32.totalorder %s27, 1
      %p50 = por %p48, %p49
      %p52 = scmp.ne.s32.totalorder %s35, %s51
      %p53 = scmp.eq.s32.totalorder %s27, 0
      %p54 = por %p52, %p53
      %s55 = ssub.s32 %s21, %s28
      %p56 = scmp.eq.s32.totalorder %s55, 0
      %s58 = sadd.s32 %s57, 1
      %s59 = scalar_select %p56, %s57, %s58
      %p62 = pneg %p56
      %p63 = scmp.eq.s32.totalorder %s21, 1
      %p64 = por %p62, %p63
      %p65 = scmp.ne.s32.totalorder %s57, %s60
      %p66 = scmp.eq.s32.totalorder %s21, 0
      %p67 = por %p65, %p66
      %p68 = scmp.ne.s32.totalorder %s57, %s60
      %p69 = scmp.eq.s32.totalorder %s26, 1
      %p70 = por %p68, %p69
      %p71 = scmp.ne.s32.totalorder %s60, %s61
      %p72 = scmp.eq.s32.totalorder %s26, 0
      %p73 = por %p71, %p72
      %p74 = scmp.ne.s32.totalorder %s60, %s61
      %p75 = scmp.eq.s32.totalorder %s27, 1
      %p76 = por %p74, %p75
      %p78 = scmp.ne.s32.totalorder %s61, %s77
      %p79 = scmp.eq.s32.totalorder %s27, 0
      %p80 = por %p78, %p79
      %s82 = sadd.s32 %s81, 1
      %p85 = scmp.eq.s32.totalorder %s21, 1
      %p86 = scmp.ne.s32.totalorder %s81, %s83
      %p87 = scmp.eq.s32.totalorder %s21, 0
      %p88 = por %p86, %p87
      %p89 = scmp.ne.s32.totalorder %s81, %s83
      %p90 = scmp.eq.s32.totalorder %s26, 1
      %p91 = por %p89, %p90
      %p92 = scmp.ne.s32.totalorder %s83, %s84
      %p93 = scmp.eq.s32.totalorder %s26, 0
      %p94 = por %p92, %p93
      %p95 = scmp.ne.s32.totalorder %s83, %s84
      %p96 = scmp.eq.s32.totalorder %s27, 1
      %p97 = por %p95, %p96
      %p99 = scmp.ne.s32.totalorder %s84, %s98
      %p100 = scmp.eq.s32.totalorder %s27, 0
      %p101 = por %p99, %p100
      %s103 = sadd.s32 %s102, 1
      %p106 = scmp.eq.s32.totalorder %s21, 1
      %p107 = scmp.ne.s32.totalorder %s102, %s104
      %p108 = scmp.eq.s32.totalorder %s21, 0
      %p109 = por %p107, %p108
      %p110 = scmp.ne.s32.totalorder %s102, %s104
      %p111 = scmp.eq.s32.totalorder %s26, 1
      %p112 = por %p110, %p111
      %p113 = scmp.ne.s32.totalorder %s104, %s105
      %p114 = scmp.eq.s32.totalorder %s26, 0
      %p115 = por %p113, %p114
      %p116 = scmp.ne.s32.totalorder %s104, %s105
      %p117 = scmp.eq.s32.totalorder %s27, 1
      %p118 = por %p116, %p117
      %p120 = scmp.ne.s32.totalorder %s105, %s119
      %p121 = scmp.eq.s32.totalorder %s27, 0
      %p122 = por %p120, %p121
      %s124 = sadd.s32 %s123, 1
      %p127 = scmp.eq.s32.totalorder %s21, 1
      %p128 = scmp.ne.s32.totalorder %s123, %s125
      %p129 = scmp.eq.s32.totalorder %s21, 0
      %p130 = por %p128, %p129
      %p131 = scmp.ne.s32.totalorder %s123, %s125
      %p132 = scmp.eq.s32.totalorder %s26, 1
      %p133 = por %p131, %p132
      %p134 = scmp.ne.s32.totalorder %s125, %s126
      %p135 = scmp.eq.s32.totalorder %s26, 0
      %p136 = por %p134, %p135
      %p137 = scmp.ne.s32.totalorder %s125, %s126
      %p138 = scmp.eq.s32.totalorder %s27, 1
      %p139 = por %p137, %p138
      %p141 = scmp.ne.s32.totalorder %s126, %s140
      %p142 = scmp.eq.s32.totalorder %s27, 0
      %p143 = por %p141, %p142
      %s145 = sadd.s32 %s144, 1
      %p148 = scmp.eq.s32.totalorder %s21, 1
      %p149 = scmp.ne.s32.totalorder %s144, %s146
      %p150 = scmp.eq.s32.totalorder %s21, 0
      %p151 = por %p149, %p150
      %p152 = scmp.ne.s32.totalorder %s144, %s146
      %p153 = scmp.eq.s32.totalorder %s26, 1
      %p154 = por %p152, %p153
      %p155 = scmp.ne.s32.totalorder %s146, %s147
      %p156 = scmp.eq.s32.totalorder %s26, 0
      %p157 = por %p155, %p156
      %p158 = scmp.ne.s32.totalorder %s146, %s147
      %p159 = scmp.eq.s32.totalorder %s27, 1
      %p160 = por %p158, %p159
      %p162 = scmp.ne.s32.totalorder %s147, %s161
      %p163 = scmp.eq.s32.totalorder %s27, 0
      %p164 = por %p162, %p163
      %s165 = ssub.s32 %s21, %s28
      %p166 = scmp.eq.s32.totalorder %s165, 0
      %s168 = sadd.s32 %s167, 1
      %s169 = scalar_select %p166, %s167, %s168
      %p172 = pneg %p166
      %p173 = scmp.eq.s32.totalorder %s21, 1
      %p174 = por %p172, %p173
      %p175 = scmp.ne.s32.totalorder %s167, %s170
      %p176 = scmp.eq.s32.totalorder %s21, 0
      %p177 = por %p175, %p176
      %p178 = scmp.ne.s32.totalorder %s167, %s170
      %p179 = scmp.eq.s32.totalorder %s26, 1
      %p180 = por %p178, %p179
      %p181 = scmp.ne.s32.totalorder %s170, %s171
      %p182 = scmp.eq.s32.totalorder %s26, 0
      %p183 = por %p181, %p182
      %p184 = scmp.ne.s32.totalorder %s170, %s171
      %p185 = scmp.eq.s32.totalorder %s27, 1
      %p186 = por %p184, %p185
      %p188 = scmp.ne.s32.totalorder %s171, %s187
      %p189 = scmp.eq.s32.totalorder %s27, 0
      %p190 = por %p188, %p189
      %p191 = scmp.le.s32.totalorder 1, %s21
      %p192 = scmp.lt.s32.totalorder %s21, 3
      %p193 = pnand %p191, %p192
      %p194 = pneg %p193
      // Predicated region
      $region9: #{tpu_custom_call.1} parent=5 // pred_check
        _
      $region10: #{tpu_custom_call.1} parent=5 // pred_check_branch
        %196 = sbr.rel (%p193) target = $region12
      $region11: #{tpu_custom_call.1} parent=5 // pred_region
        %s197 = ssub.s32 %s21, 1
        // Predicated region
        $region13: #{tpu_custom_call.1} parent=11 // pred_check
          %p198 = pneg %p94
        $region14: #{tpu_custom_call.1} parent=11 // pred_check_branch
          %200 = sbr.rel (%p198) target = $region16
        $region15: #{tpu_custom_call.1} parent=11 // pred_region
          %s202 = ssub.s32 256, 256
          %203 = vsyncadd [#allocation6], %s202
          %s204 = sshll.u32 [#allocation7], 4
          %s205 = int_to_ptr.vmem [resolvable:$true] %s204
          %210 = dma.hbm_to_vmem [thread:$0]  %s2, 256, %s205, [#allocation6], 64, 64, 4
        $region16: #{tpu_custom_call.1} parent=11 // pred_fallthru
          _
        // Predicated region
        $region17: #{tpu_custom_call.1} parent=11 // pred_check
          %p211 = pneg %p115
        $region18: #{tpu_custom_call.1} parent=11 // pred_check_branch
          %213 = sbr.rel (%p211) target = $region20
        $region19: #{tpu_custom_call.1} parent=11 // pred_region
          _
        $region20: #{tpu_custom_call.1} parent=11 // pred_fallthru
          _
        // Predicated region
        $region21: #{tpu_custom_call.1} parent=11 // pred_check
          %p214 = pneg %p136
        $region22: #{tpu_custom_call.1} parent=11 // pred_check_branch
          %216 = sbr.rel (%p214) target = $region24
        $region23: #{tpu_custom_call.1} parent=11 // pred_region
          _
        $region24: #{tpu_custom_call.1} parent=11 // pred_fallthru
          _
        // Predicated region
        $region25: #{tpu_custom_call.1} parent=11 // pred_check
          %p217 = pneg %p157
        $region26: #{tpu_custom_call.1} parent=11 // pred_check_branch
          %219 = sbr.rel (%p217) target = $region28
        $region27: #{tpu_custom_call.1} parent=11 // pred_region
          _
        $region28: #{tpu_custom_call.1} parent=11 // pred_fallthru
          _
      $region12: #{tpu_custom_call.1} parent=5 // pred_fallthru
        _
      %p220 = scmp.lt.s32.totalorder %s21, 2
      // Predicated region
      $region29: #{tpu_custom_call.1} parent=5 // pred_check
        %p221 = pneg %p220
      $region30: #{tpu_custom_call.1} parent=5 // pred_check_branch
        %223 = sbr.rel (%p221) target = $region32
      $region31: #{tpu_custom_call.1} parent=5 // pred_region
        // Predicated region
        $region33: #{tpu_custom_call.1} parent=31 // pred_check
          %p224 = pneg %p41
        $region34: #{tpu_custom_call.1} parent=31 // pred_check_branch
          %226 = sbr.rel (%p224) target = $region36
        $region35: #{tpu_custom_call.1} parent=31 // pred_region
          %s227 = sand.u32 %s31, 1
          %s228 = scalar_lea.sflag [#allocation3], %s227
          %s229 = sand.u32 %s31, 1
          %s230 = smul.addr %s229, 16
          %s231 = scalar_lea.vmem [#allocation2], %s230
          %s232 = smul.u32 2, %s21
          %s233 = ssub.s32 3, %s232
          %p234 = scmp.lt.s32.totalorder %s233, 2
          %s235 = scalar_select %p234, %s233, 2
          %s236 = smul.u32 128, %s235
          %s238 = ssub.s32 256, %s236
          %239 = vsyncadd %s228, %s238
          %p240 = scmp.ne.s32.totalorder 0, %s236
          %s241 = smul.addr %s232, 128
          %s242 = scalar_lea.hbm %s0, %s241
          %s243 = smul.u32 8, %s235
          %s244 = sshll.u32 %s231, 4
          %s245 = int_to_ptr.vmem [resolvable:$true] %s244
          %s246 = sshll.u32 %s243, 4
          %250 = dma.hbm_to_vmem [thread:$0]  (%p240), %s242, %s246, %s245, %s228, 128, 128, 8
        $region36: #{tpu_custom_call.1} parent=31 // pred_fallthru
          _
        // Predicated region
        $region37: #{tpu_custom_call.1} parent=31 // pred_check
          %p251 = pneg %p67
        $region38: #{tpu_custom_call.1} parent=31 // pred_check_branch
          %253 = sbr.rel (%p251) target = $region40
        $region39: #{tpu_custom_call.1} parent=31 // pred_region
          %s254 = sand.u32 %s21, 1
          %s255 = scalar_lea.sflag [#allocation6], %s254
          %s256 = sand.u32 %s57, 1
          %s257 = smul.addr %s256, 16
          %s258 = scalar_lea.vmem [#allocation5], %s257
          %s259 = smul.u32 2, %s21
          %s260 = ssub.s32 3, %s259
          %p261 = scmp.lt.s32.totalorder %s260, 2
          %s262 = scalar_select %p261, %s260, 2
          %s263 = smul.u32 128, %s262
          %s265 = ssub.s32 256, %s263
          %266 = vsyncadd %s255, %s265
          %p267 = scmp.ne.s32.totalorder 0, %s263
          %s268 = smul.addr %s259, 128
          %s269 = scalar_lea.hbm %s1, %s268
          %s270 = smul.u32 8, %s262
          %s271 = sshll.u32 %s258, 4
          %s272 = int_to_ptr.vmem [resolvable:$true] %s271
          %s273 = sshll.u32 %s270, 4
          %277 = dma.hbm_to_vmem [thread:$0]  (%p267), %s269, %s273, %s272, %s255, 128, 128, 8
        $region40: #{tpu_custom_call.1} parent=31 // pred_fallthru
          _
      $region32: #{tpu_custom_call.1} parent=5 // pred_fallthru
        _
      %p278 = scmp.le.s32.totalorder 1, %s21
      %p279 = scmp.lt.s32.totalorder %s21, 3
      %p280 = pnand %p278, %p279
      %p281 = pneg %p280
      // Predicated region
      $region41: #{tpu_custom_call.1} parent=5 // pred_check
        _
      $region42: #{tpu_custom_call.1} parent=5 // pred_check_branch
        %283 = sbr.rel (%p280) target = $region44
      $region43: #{tpu_custom_call.1} parent=5 // pred_region
        %s284 = ssub.s32 %s21, 1
        %s285 = sand.u32 %s34, 1
        %s286 = scalar_lea.sflag [#allocation3], %s285
        %s287 = sand.u32 %s34, 1
        %s288 = smul.addr %s287, 16
        %s289 = scalar_lea.vmem [#allocation2], %s288
        // Predicated region
        $region45: #{tpu_custom_call.1} parent=43 // pred_check
          %p290 = pneg %p47
        $region46: #{tpu_custom_call.1} parent=43 // pred_check_branch
          %292 = sbr.rel (%p290) target = $region48
        $region47: #{tpu_custom_call.1} parent=43 // pred_region
          %293 = dma.done %s286, 256
        $region48: #{tpu_custom_call.1} parent=43 // pred_fallthru
          _
        %s294 = sand.u32 %s26, 1
        %s295 = scalar_lea.sflag [#allocation6], %s294
        %s296 = sand.u32 %s60, 1
        %s297 = smul.addr %s296, 16
        %s298 = scalar_lea.vmem [#allocation5], %s297
        // Predicated region
        $region49: #{tpu_custom_call.1} parent=43 // pred_check
          %p299 = pneg %p73
        $region50: #{tpu_custom_call.1} parent=43 // pred_check_branch
          %301 = sbr.rel (%p299) target = $region52
        $region51: #{tpu_custom_call.1} parent=43 // pred_region
          %302 = dma.done %s295, 256
        $region52: #{tpu_custom_call.1} parent=43 // pred_fallthru
          _
        // Predicated region
        $region53: #{tpu_custom_call.1} parent=43 // pred_check
          %p303 = pneg %p94
        $region54: #{tpu_custom_call.1} parent=43 // pred_check_branch
          %305 = sbr.rel (%p303) target = $region56
        $region55: #{tpu_custom_call.1} parent=43 // pred_region
          %306 = dma.done [#allocation6], 256
        $region56: #{tpu_custom_call.1} parent=43 // pred_fallthru
          _
        %s307 = sand.u32 %s34, 1
        %s308 = scalar_lea.sflag [#allocation3], %s307
        %s309 = sand.u32 %s34, 1
        %s310 = smul.addr %s309, 16
        %s311 = scalar_lea.vmem [#allocation2], %s310
        %p312 = pneg %p47
        %p313 = pneg %p44
        %s314 = sand.u32 %s26, 1
        %s315 = scalar_lea.sflag [#allocation6], %s314
        %s316 = sand.u32 %s60, 1
        %s317 = smul.addr %s316, 16
        %s318 = scalar_lea.vmem [#allocation5], %s317
        %p319 = pneg %p73
        %p320 = pneg %p70
        %p321 = pneg %p94
        %p322 = pneg %p91
        %p323 = pneg %p115
        %p324 = pneg %p112
        %p325 = pneg %p136
        %p326 = pneg %p133
        %p327 = pneg %p157
        %p328 = pneg %p154
        %p329 = pneg %p183
        %p330 = pneg %p180
        %s331 = sand.u32 %s170, 1
        %s332 = scalar_lea.sflag [#allocation4], %s331
        %s333 = sand.u32 %s170, 1
        %s334 = smul.addr %s333, 16
        %s335 = scalar_lea.vmem [#allocation8], %s334
        %s336 = smul.u32 2, %s26
        %s337 = ssub.s32 3, %s336
        %p338 = scmp.lt.s32.totalorder %s337, 2
        %s339 = scalar_select %p338, %s337, 2
        %s340 = smul.u32 128, %s339
        %s341 = smul.u32 2, %s26
        %s342 = ssub.s32 3, %s341
        %p343 = scmp.lt.s32.totalorder %s342, 2
        %s344 = scalar_select %p343, %s342, 2
        %s345 = smul.u32 128, %s344
        %s346 = smul.u32 2, %s26
        %s347 = ssub.s32 3, %s346
        %p348 = scmp.lt.s32.totalorder %s347, 2
        %s349 = scalar_select %p348, %s347, 2
        %s350 = smul.u32 128, %s349
        %v352 = vld [vmem:[%s289] sm:$0xff]
        %v353 = vld [vmem:[%s289 + $0x8] sm:$0xff]
        %v354 = vpack.c.bf16 %v353, %v352
        %v355 = vld [vmem:[#allocation7] sm:$0xf]
        %v356 = vld [vmem:[#allocation7 + $0x4] sm:$0xf]
        %v357 = vld [vmem:[#allocation7 + $0x8] sm:$0xf]
        %v358 = vld [vmem:[#allocation7 + $0xc] sm:$0xf]
        %v359 = vld [vmem:[%s3] sm:$0x1]
        %v361 = vlaneseq
        %v362 = vshrl.u32 %v361, 7
        %v363 = vsub.s32 0, %v362
        %v364 = vrot.slane %v359, %v363
        %v370 = vunpack.c.l.b16 %v355
        %v371 = vunpack.c.l.b16 %v356
        %v372 = vunpack.c.l.b16 %v357
        %v373 = vunpack.c.l.b16 %v358
        %v374 = vpack.c.b16 %v371, %v370
        %v375 = vpack.c.b16 %v373, %v372
        %vm378 = vcmask 261120
        %v380 = vsel %vm378, %v354, 0
        %382 = vmatprep.subr.bf16.mxu0 0
        %383 = vmatpush1.bf16.msra.mxu0 %v374
        %384 = vmatprep.subr.bf16.mxu0 0
        %385 = vmatpush1.bf16.msra.mxu0 %v375
        %386 = vmatprep.subr.bf16.mxu0 0
        %387 = vmatpush1.bf16.msra.mxu0 0
        %388 = vmatprep.subr.bf16.mxu0 0
        %389 = vmatpush1.bf16.msra.mxu0 0
        %390 = vmatprep.subr.bf16.mxu0 0
        %391 = vmatpush1.bf16.msra.mxu0 0
        %392 = vmatprep.subr.bf16.mxu0 0
        %393 = vmatpush1.bf16.msra.mxu0 0
        %394 = vmatprep.subr.bf16.mxu0 0
        %395 = vmatpush1.bf16.msra.mxu0 0
        %396 = vmatprep.subr.bf16.mxu0 0
        %397 = vmatpush1.bf16.msra.mxu0 0
        %398 = vmatprep.subr.bf16.mxu0 0
        %399 = vmatpush1.bf16.msra.mxu0 0
        %400 = vmatprep.subr.bf16.mxu0 0
        %401 = vmatpush1.bf16.msra.mxu0 0
        %402 = vmatprep.subr.bf16.mxu0 0
        %403 = vmatpush1.bf16.msra.mxu0 0
        %404 = vmatprep.subr.bf16.mxu0 0
        %405 = vmatpush1.bf16.msra.mxu0 0
        %406 = vmatprep.subr.bf16.mxu0 0
        %407 = vmatpush1.bf16.msra.mxu0 0
        %408 = vmatprep.subr.bf16.mxu0 0
        %409 = vmatpush1.bf16.msra.mxu0 0
        %410 = vmatprep.subr.bf16.mxu0 0
        %411 = vmatpush1.bf16.msra.mxu0 0
        %412 = vmatprep.subr.bf16.mxu0 0
        %413 = vmatpush1.bf16.msra.mxu0 0
        %414 = vmatprep.mubr.bf16.mxu0 0
        %415 = vmatmul.mubr.bf16.gmra.mrb[0].mxu0 %v380
        %v416 = vpop.f32.mrb[0].mxu0
        %v417 = vadd.f32 %v364, %v416
        %v418 = vpop.f32.mrb[0].mxu0
        %v419 = vpop.f32.mrb[0].mxu0
        %v420 = vadd.f32 %v364, %v419
        %v421 = vpop.f32.mrb[0].mxu0
        %422 = vdwg.mxu0
        %v423 = vld [vmem:[%s298] sm:$0xff]
        %v424 = vld [vmem:[%s298 + $0x8] sm:$0xff]
        %v425 = vadd.f32 %v417, %v423
        %v426 = vadd.f32 %v420, %v424
        %v427 = vsel %vm378, %v425, 0.0
        %428 = vadd.xlane.f32.xlu0 %v427
        %v429 = vpop.xlane.xlu0 %428
        %v430 = vsel %vm378, %v426, 0.0
        %431 = vadd.xlane.f32.xlu0 %v430
        %v432 = vpop.xlane.xlu0 %431
        %v433 = vmul.f32 %v429, 0.03125
        %v434 = vmul.f32 %v432, 0.03125
        %v435 = vsub.f32 %v425, %v433
        %v436 = vsub.f32 %v426, %v434
        %v437 = vmul.f32 %v435, %v435
        %v438 = vmul.f32 %v436, %v436
        %v439 = vsel %vm378, %v437, 0.0
        %440 = vadd.xlane.f32.xlu0 %v439
        %v441 = vpop.xlane.xlu0 %440
        %v442 = vsel %vm378, %v438, 0.0
        %443 = vadd.xlane.f32.xlu0 %v442
        %v444 = vpop.xlane.xlu0 %443
        %v445 = vmul.f32 %v441, 0.03125
        %v446 = vmul.f32 %v444, 0.03125
        %v447 = vadd.f32 %v445, 1e-12
        %v448 = vadd.f32 %v446, 1e-12
        %v449 = vrsqrt.pop %v447
        %v450 = vrsqrt.pop %v448
        %v451 = vmul.f32 %v435, %v449
        %v452 = vmul.f32 %v436, %v450
        %v453 = vld [vmem:[%s4] sm:$0x1]
        %v455 = vlaneseq
        %v456 = vshrl.u32 %v455, 7
        %v457 = vsub.s32 0, %v456
        %v458 = vrot.slane %v453, %v457
        %v460 = vmul.f32 %v451, %v458
        %v461 = vmul.f32 %v452, %v458
        %v462 = vld [vmem:[%s5] sm:$0x1]
        %v464 = vlaneseq
        %v465 = vshrl.u32 %v464, 7
        %v466 = vsub.s32 0, %v465
        %v467 = vrot.slane %v462, %v466
        %v469 = vadd.f32 %v460, %v467
        %v470 = vadd.f32 %v461, %v467
        %471 = vst.msk [vmem:[%s335] sm:$0xff] %vm378, %v469
        %472 = vst.msk [vmem:[%s335 + $0x8] sm:$0xff] %vm378, %v470
        %s473 = sand.u32 %s170, 1
        %s474 = scalar_lea.sflag [#allocation4], %s473
        %s475 = sand.u32 %s170, 1
        %s476 = smul.addr %s475, 16
        %s477 = scalar_lea.vmem [#allocation8], %s476
        // Predicated region
        $region57: #{tpu_custom_call.1} parent=43 // pred_check
          %p478 = pneg %p180
        $region58: #{tpu_custom_call.1} parent=43 // pred_check_branch
          %480 = sbr.rel (%p478) target = $region60
        $region59: #{tpu_custom_call.1} parent=43 // pred_region
          %s481 = smul.u32 2, %s26
          %s482 = ssub.s32 3, %s481
          %p483 = scmp.lt.s32.totalorder %s482, 2
          %s484 = scalar_select %p483, %s482, 2
          %s485 = smul.u32 128, %s484
          %s487 = ssub.s32 256, %s485
          %488 = vsyncadd %s474, %s487
          %p489 = scmp.ne.s32.totalorder 0, %s485
          %s490 = smul.addr %s481, 128
          %s491 = scalar_lea.hbm %s6, %s490
          %s492 = smul.u32 8, %s484
          %s493 = sshll.u32 %s477, 4
          %s494 = int_to_ptr.vmem [resolvable:$true] %s493
          %s495 = sshll.u32 %s492, 4
          %499 = dma.vmem_to_hbm [thread:$0]  (%p489), %s494, %s495, %s491, %s474, 128, 128, 8
        $region60: #{tpu_custom_call.1} parent=43 // pred_fallthru
          _
      $region44: #{tpu_custom_call.1} parent=5 // pred_fallthru
        _
      %p500 = scmp.le.s32.totalorder 2, %s21
      // Predicated region
      $region61: #{tpu_custom_call.1} parent=5 // pred_check
        %p501 = pneg %p500
      $region62: #{tpu_custom_call.1} parent=5 // pred_check_branch
        %503 = sbr.rel (%p501) target = $region64
      $region63: #{tpu_custom_call.1} parent=5 // pred_region
        %s504 = ssub.s32 %s21, 2
        // Predicated region
        $region65: #{tpu_custom_call.1} parent=63 // pred_check
          %p505 = pneg %p186
        $region66: #{tpu_custom_call.1} parent=63 // pred_check_branch
          %507 = sbr.rel (%p505) target = $region68
        $region67: #{tpu_custom_call.1} parent=63 // pred_region
          %s508 = sand.u32 %s171, 1
          %s509 = scalar_lea.sflag [#allocation4], %s508
          %s510 = sand.u32 %s171, 1
          %s511 = smul.addr %s510, 16
          %s512 = scalar_lea.vmem [#allocation8], %s511
          %513 = dma.done %s509, 256
        $region68: #{tpu_custom_call.1} parent=63 // pred_fallthru
          _
      $region64: #{tpu_custom_call.1} parent=5 // pred_fallthru
        _
    $region6: #{tpu_custom_call.1} parent=1 // loop_footer
      %s25 = sadd.s32 1, %s21
    $region7: #{tpu_custom_call.1} parent=1 // loop_footer_branch
      %20 = sbr.rel target = $region3
    $region8: #{tpu_custom_call.1} parent=1 // loop_exit
      _
    %514 = vsyncpa [#allocation3], 1
    %s515 = scalar_lea.sflag [#allocation3], 1
    %516 = vsyncpa %s515, 1
    %517 = vsyncpa [#allocation6], 1
    %s518 = scalar_lea.sflag [#allocation6], 1
    %519 = vsyncpa %s518, 1
    %520 = vsyncpa [#allocation4], 1
    %s521 = scalar_lea.sflag [#allocation4], 1
    %522 = vsyncpa %s521, 1

</llo_original>
